<compile_context>
chip_gen: v6e
topology: v6e:2x2x1
jax: 0.10.0
libtpu: 0.0.40
codegen_flags: <defaults>
</compile_context>

<pallas_src>
import functools

import jax
import jax.numpy as jnp
from jax.experimental import pallas as pl
from jax.experimental.pallas import tpu as pltpu

EPS = 1e-5


# --------------------------------------------------------------------------------------
# In-kernel helpers
# --------------------------------------------------------------------------------------
def _causal_conv_block(halo_ref, x_ref, w_ref, *, lt, hpad, pad, k, dilation,
                       tile_l, c_in, fold_taps):
    """K-tap causal conv of one (tile_l, C_in) bf16 tile against (K*C_in, C_out) weights.

    halo_ref : (hpad, C_in)  bf16 -- the hpad rows immediately preceding this tile
               (garbage for the first tile; masked to zeros = causal padding).
    x_ref    : (tile_l, C_in) bf16 -- the tile itself (also the residual source).
    w_ref    : (K*C_in, C_out) bf16 -- tap-major flattened weights.
    Returns (acc f32 (tile_l, C_out), curr bf16 (tile_l, C_in)).
    """
    curr = x_ref[...]
    halo = halo_ref[...]
    halo = jnp.where(lt > 0, halo, jnp.zeros_like(halo))     # causal zero-pad on tile 0
    win = jnp.concatenate([halo, curr], axis=0)               # (hpad + tile_l, C_in) bf16
    offs = [hpad - pad + t * dilation for t in range(k)]       # static tap offsets

    if fold_taps:
        taps = [win[o:o + tile_l, :] for o in offs]
        lhs = taps[0] if k == 1 else jnp.concatenate(taps, axis=-1)   # (tile_l, K*C_in)
        acc = jnp.dot(lhs, w_ref[...], preferred_element_type=jnp.float32)
    else:
        acc = jnp.zeros((tile_l, w_ref.shape[-1]), jnp.float32)
        for t, o in enumerate(offs):
            acc = acc + jnp.dot(win[o:o + tile_l, :],
                                w_ref[t * c_in:(t + 1) * c_in, :],
                                preferred_element_type=jnp.float32)
    return acc, curr


def _tcn_stats_kernel(halo_ref, x_ref, w_ref, sum_ref, sq_ref, *,
                      hpad, pad, k, dilation, tile_l, c_in, fold_taps):
    """Pass 1: per-tile conv + per-batch per-channel sum / sum-of-squares accumulation."""
    lt = pl.program_id(1)

    @pl.when(lt == 0)
    def _init():
        sum_ref[...] = jnp.zeros_like(sum_ref)
        sq_ref[...] = jnp.zeros_like(sq_ref)

    acc, _ = _causal_conv_block(halo_ref, x_ref, w_ref, lt=lt, hpad=hpad, pad=pad,
                                k=k, dilation=dilation, tile_l=tile_l, c_in=c_in,
                                fold_taps=fold_taps)
    sum_ref[...] += jnp.sum(acc, axis=0, keepdims=True)
    sq_ref[...] += jnp.sum(acc * acc, axis=0, keepdims=True)


def _tcn_apply_kernel(halo_ref, x_ref, w_ref, shift_ref, out_ref, *,
                      hpad, pad, k, dilation, tile_l, c_in, c_out, g, fold_taps):
    """Pass 2: conv recompute (BN scale folded into w) + shift + ReLU + residual."""
    lt = pl.program_id(1)
    acc, curr = _causal_conv_block(halo_ref, x_ref, w_ref, lt=lt, hpad=hpad, pad=pad,
                                   k=k, dilation=dilation, tile_l=tile_l, c_in=c_in,
                                   fold_taps=fold_taps)
    y = acc + shift_ref[...]
    y = jnp.maximum(y, 0.0) + curr.astype(jnp.float32)       # residual from the same tile
    y = y.astype(out_ref.dtype)
    if g > 1:                                                  # lane-dense store layout
        y = y.reshape(tile_l // g, g * c_out)
    out_ref[...] = y


# --------------------------------------------------------------------------------------
# Wrapper-side sizing helpers
# --------------------------------------------------------------------------------------
def _pick_tile_l(seq_len, c_in, c_out, hpad):
    """Largest row tile dividing seq_len with ~<=2 MiB of per-block activation bytes."""
    cap_rows = 256 if max(c_in, c_out) >= 512 else 4096        # avoid acc spill at huge C
    target_bytes = 2 * 1024 * 1024
    best = None
    for cand in (4096, 2048, 1024, 512, 256, 128, 64, 32, 16):
        if cand > cap_rows or seq_len % cand or cand % hpad:
            continue
        if best is None:
            best = cand
        if cand * (2 * c_in + 4 * c_out) <= target_bytes:
            best = cand
            break
    return best if best is not None else seq_len


def _vmem_limit_bytes(hpad, tile_l, c_in, c_out, k, out_itemsize):
    try:
        info = pltpu.get_tpu_info()
        cap_phys = getattr(info, "vmem_capacity_bytes", None)
        cap = int(0.75 * cap_phys) if cap_phys else 48 * 2**20
    except Exception:
        cap = 48 * 2**20                                        # safe for 64 MiB v7x
    blk_in = (hpad + tile_l) * c_in * 2                         # halo + tile, bf16
    blk_w = k * c_in * c_out * 2
    blk_out = tile_l * c_out * out_itemsize
    temps = ((hpad + tile_l) * c_in * 2                         # concat window
             + tile_l * k * c_in * 2                            # folded LHS
             + 4 * tile_l * c_out * 4)                          # acc / epilogue temps
    est = 2 * (2 * blk_in) + 2 * blk_w + 2 * blk_out + temps + 64 * c_out * 4
    return int(min(cap, max(16 * 2**20, 2 * est)))


# --------------------------------------------------------------------------------------
# Public entry point
# --------------------------------------------------------------------------------------
def tcn_layer(x_ncl, weight, bias, gamma, beta, *, dilation=1, tile_l=None,
              out_dtype=jnp.float32, channels_last_out=False):
    """x_ncl: (N, C, L) like the PyTorch Conv1d input.  Returns (N, C, L) by default."""
    n, c_in, seq_len = x_ncl.shape
    c_out, c_in_w, k = weight.shape
    assert c_in == c_in_w and c_out == c_in, "residual add requires C_out == C_in"
    pad = (k - 1) * dilation
    hpad = 16 * max(1, -(-pad // 16))                           # halo rows (bf16 aligned)

    if tile_l is None:
        tile_l = _pick_tile_l(seq_len, c_in, c_out, hpad)
    assert seq_len % tile_l == 0, "seq_len must be divisible by tile_l"
    assert tile_l % hpad == 0, "tile_l must be a multiple of the halo size"
    num_lt = seq_len // tile_l
    r = tile_l // hpad                                          # halo blocks per tile

    fold_taps = c_in <= 128                                     # single big matmul per tile

    # Lane-dense output grouping: (L, C) -> (L/g, g*C) with g*C == 128 when possible.
    g = 1
    if c_out < 128 and 128 % c_out == 0:
        g = 128 // c_out
        while g > 1 and tile_l % (8 * g) != 0:
            g //= 2

    # Channels-last bf16 input (cast before transpose; no padded copy is materialized).
    x_nlc = jnp.transpose(x_ncl.astype(jnp.bfloat16), (0, 2, 1))        # (N, L, C)
    w_flat = jnp.transpose(weight, (2, 1, 0)).astype(jnp.float32).reshape(k * c_in, c_out)
    w_bf16 = w_flat.astype(jnp.bfloat16)
    del bias  # additive conv bias is exactly cancelled by training-mode BN mean subtraction

    out_itemsize = jnp.dtype(out_dtype).itemsize
    vmem_limit = _vmem_limit_bytes(hpad, tile_l, c_in, c_out, k, out_itemsize)

    grid = (n, num_lt)
    flops_conv = 2 * n * seq_len * k * c_in * c_out
    x_bytes = n * seq_len * c_in * 2
    halo_bytes = n * num_lt * hpad * c_in * 2
    w_bytes = k * c_in * c_out * 2

    halo_spec = pl.BlockSpec((None, hpad, c_in),
                             lambda b, l: (b, jnp.maximum(l * r - 1, 0), 0))
    curr_spec = pl.BlockSpec((None, tile_l, c_in), lambda b, l: (b, l, 0))
    w_spec = pl.BlockSpec((k * c_in, c_out), lambda b, l: (0, 0))

    # ---------------- pass 1: per-batch BN statistics (megacore-parallel over N) -------
    stats_kernel = functools.partial(
        _tcn_stats_kernel, hpad=hpad, pad=pad, k=k, dilation=dilation,
        tile_l=tile_l, c_in=c_in, fold_taps=fold_taps)

    csum_b, csq_b = pl.pallas_call(
        stats_kernel,
        out_shape=(jax.ShapeDtypeStruct((n, 1, c_out), jnp.float32),
                   jax.ShapeDtypeStruct((n, 1, c_out), jnp.float32)),
        grid=grid,
        in_specs=[halo_spec, curr_spec, w_spec],
        out_specs=(pl.BlockSpec((None, 1, c_out), lambda b, l: (b, 0, 0)),
                   pl.BlockSpec((None, 1, c_out), lambda b, l: (b, 0, 0))),
        compiler_params=pltpu.CompilerParams(
            dimension_semantics=("parallel", "arbitrary"),
            vmem_limit_bytes=vmem_limit),
        cost_estimate=pl.CostEstimate(
            flops=flops_conv + 3 * n * seq_len * c_out,
            transcendentals=0,
            bytes_accessed=x_bytes + halo_bytes + w_bytes + 2 * n * c_out * 4),
    )(x_nlc, x_nlc, w_bf16)

    # Fold BN (training-mode batch stats, biased variance) into scale/shift; then fold
    # scale into the pass-2 weights so the in-kernel epilogue is only +shift/ReLU/residual.
    count = float(n * seq_len)
    csum = jnp.sum(csum_b[:, 0, :], axis=0)
    csq = jnp.sum(csq_b[:, 0, :], axis=0)
    mean = csum / count
    var = jnp.maximum(csq / count - mean * mean, 0.0)
    inv_std = jax.lax.rsqrt(var + EPS)
    scale = gamma.astype(jnp.float32) * inv_std
    shift = (beta.astype(jnp.float32) - mean * scale).reshape(1, c_out)
    w2_bf16 = (w_flat * scale[None, :]).astype(jnp.bfloat16)

    # ---------------- pass 2: conv recompute + shift + ReLU + residual -----------------
    apply_kernel = functools.partial(
        _tcn_apply_kernel, hpad=hpad, pad=pad, k=k, dilation=dilation,
        tile_l=tile_l, c_in=c_in, c_out=c_out, g=g, fold_taps=fold_taps)

    out3 = pl.pallas_call(
        apply_kernel,
        out_shape=jax.ShapeDtypeStruct((n, seq_len // g, g * c_out), out_dtype),
        grid=grid,
        in_specs=[halo_spec, curr_spec, w_spec,
                  pl.BlockSpec((1, c_out), lambda b, l: (0, 0))],
        out_specs=pl.BlockSpec((None, tile_l // g, g * c_out), lambda b, l: (b, l, 0)),
        compiler_params=pltpu.CompilerParams(
            dimension_semantics=("parallel", "parallel"),
            vmem_limit_bytes=vmem_limit),
        cost_estimate=pl.CostEstimate(
            flops=flops_conv + 4 * n * seq_len * c_out,
            transcendentals=0,
            bytes_accessed=(x_bytes + halo_bytes + w_bytes
                            + n * seq_len * c_out * out_itemsize)),
    )(x_nlc, x_nlc, w2_bf16, shift)

    out_nlc = out3.reshape(n, seq_len, c_out)                  # free row-major regrouping
    if channels_last_out:
        return out_nlc
    return jnp.transpose(out_nlc, (0, 2, 1))                   # back to PyTorch (N, C, L)


# --------------------------------------------------------------------------------------
# Pure-JAX reference (mirrors the PyTorch forward, training-mode BN)
# --------------------------------------------------------------------------------------
def tcn_layer_ref(x_ncl, weight, bias, gamma, beta, *, dilation=1,
                  matmul_dtype=jnp.bfloat16):
    n, c_in, seq_len = x_ncl.shape
    c_out, _, k = weight.shape
    pad = (k - 1) * dilation
    conv = jax.lax.conv_general_dilated(
        x_ncl.astype(matmul_dtype), weight.astype(matmul_dtype),
        window_strides=(1,), padding=[(pad, 0)], rhs_dilation=(dilation,),
        dimension_numbers=("NCH", "OIH", "NCH"),
        preferred_element_type=jnp.float32)
    conv = conv + bias.reshape(1, c_out, 1).astype(jnp.float32)
    mean = jnp.mean(conv, axis=(0, 2), keepdims=True)
    var = jnp.mean((conv - mean) ** 2, axis=(0, 2), keepdims=True)
    y = (conv - mean) * jax.lax.rsqrt(var + EPS)
    y = y * gamma.reshape(1, c_out, 1).astype(jnp.float32) \
        + beta.reshape(1, c_out, 1).astype(jnp.float32)
    resid = x_ncl.astype(matmul_dtype).astype(jnp.float32)
    return jnp.maximum(y, 0.0) + resid


if __name__ == "__main__":
    # Small deterministic example consistent with the module:
    # in_channels == out_channels (residual add), kernel_size=3, dilation=2.
    # tile_l=32 < L=64 so the halo-tiled path (lt > 0) is exercised.
    N, C, L, K, DIL = 2, 32, 64, 3, 2

    key = jax.random.PRNGKey(0)
    kx, kw, kb, kg, kbt = jax.random.split(key, 5)
    x = jax.random.normal(kx, (N, C, L), dtype=jnp.float32)
    weight = 0.1 * jax.random.normal(kw, (C, C, K), dtype=jnp.float32)
    bias = 0.1 * jax.random.normal(kb, (C,), dtype=jnp.float32)
    gamma = 1.0 + 0.1 * jax.random.normal(kg, (C,), dtype=jnp.float32)
    beta = 0.1 * jax.random.normal(kbt, (C,), dtype=jnp.float32)

    out = tcn_layer(x, weight, bias, gamma, beta, dilation=DIL, tile_l=32)
    out = jax.block_until_ready(out)
    assert out.shape == (N, C, L)

    # Check against a reference with matching (bf16-input, f32-accumulate) conv.
    ref_bf16 = tcn_layer_ref(x, weight, bias, gamma, beta, dilation=DIL,
                             matmul_dtype=jnp.bfloat16)
    assert jnp.allclose(out, ref_bf16, rtol=1e-2, atol=2e-2), (
        float(jnp.max(jnp.abs(out - ref_bf16))))

    # Loose sanity check against the full-f32 PyTorch-equivalent reference.
    ref_f32 = tcn_layer_ref(x, weight, bias, gamma, beta, dilation=DIL,
                            matmul_dtype=jnp.float32)
    assert jnp.allclose(out, ref_f32, rtol=5e-2, atol=1e-1), (
        float(jnp.max(jnp.abs(out - ref_f32))))

    print("KERNEL_OK")
</pallas_src>

<mosaic_0001>
module attributes {stable_mosaic.version = 11 : i64} {
  func.func @_tcn_stats_kernel(%arg0: i32, %arg1: i32, %arg2: memref<1x16x32xbf16, #tpu.memory_space<vmem>>, %arg3: memref<1x32x32xbf16, #tpu.memory_space<vmem>>, %arg4: memref<96x32xbf16, #tpu.memory_space<vmem>>, %arg5: memref<1x1x32xf32, #tpu.memory_space<vmem>>, %arg6: memref<1x1x32xf32, #tpu.memory_space<vmem>>) attributes {dimension_semantics = [#tpu.dimension_semantics<parallel>, #tpu.dimension_semantics<arbitrary>], iteration_bounds = array<i64: 2, 2>, scalar_prefetch = 0 : i64, scratch_operands = 0 : i64, tpu.core_type = #tpu.core_type<tc>, window_params = [{transform_indices = @transform_0, window_bounds = array<i64: 1, 16, 32>}, {transform_indices = @transform_1, window_bounds = array<i64: 1, 32, 32>}, {pipeline_mode = #tpu.pipeline_mode<synchronous>, transform_indices = @transform_2, window_bounds = array<i64: 96, 32>}, {transform_indices = @transform_3, window_bounds = array<i64: 1, 1, 32>}, {transform_indices = @transform_4, window_bounds = array<i64: 1, 1, 32>}]} {
    %c0_i32 = arith.constant 0 : i32
    %0 = arith.cmpi eq, %arg1, %c0_i32 : i32
    %1 = arith.extui %0 : i1 to i32
    %c0_i32_0 = arith.constant 0 : i32
    %2 = arith.cmpi ne, %1, %c0_i32_0 : i32
    scf.if %2 {
      %cst_24 = arith.constant 0.000000e+00 : f32
      %34 = vector.broadcast %cst_24 : f32 to vector<1x32xf32>
      %c0_25 = arith.constant 0 : index
      %c0_26 = arith.constant 0 : index
      %c0_27 = arith.constant 0 : index
      %35 = vector.load %arg5[%c0_25, %c0_26, %c0_27] : memref<1x1x32xf32, #tpu.memory_space<vmem>>, vector<1x1x32xf32>
      %36 = vector.shape_cast %35 : vector<1x1x32xf32> to vector<1x32xf32>
      %37 = vector.shape_cast %34 : vector<1x32xf32> to vector<1x1x32xf32>
      tpu.vector_store %arg5[%c0_25, %c0_26, %c0_27], %37 {strides = array<i32>} : memref<1x1x32xf32, #tpu.memory_space<vmem>>, vector<1x1x32xf32>,
      %cst_28 = arith.constant 0.000000e+00 : f32
      %38 = vector.broadcast %cst_28 : f32 to vector<1x32xf32>
      %c0_29 = arith.constant 0 : index
      %c0_30 = arith.constant 0 : index
      %c0_31 = arith.constant 0 : index
      %39 = vector.load %arg6[%c0_29, %c0_30, %c0_31] : memref<1x1x32xf32, #tpu.memory_space<vmem>>, vector<1x1x32xf32>
      %40 = vector.shape_cast %39 : vector<1x1x32xf32> to vector<1x32xf32>
      %41 = vector.shape_cast %38 : vector<1x32xf32> to vector<1x1x32xf32>
      tpu.vector_store %arg6[%c0_29, %c0_30, %c0_31], %41 {strides = array<i32>} : memref<1x1x32xf32, #tpu.memory_space<vmem>>, vector<1x1x32xf32>,
    } else {
    }
    %c0 = arith.constant 0 : index
    %c0_1 = arith.constant 0 : index
    %c0_2 = arith.constant 0 : index
    %3 = vector.load %arg3[%c0, %c0_1, %c0_2] : memref<1x32x32xbf16, #tpu.memory_space<vmem>>, vector<1x32x32xbf16>
    %4 = vector.shape_cast %3 : vector<1x32x32xbf16> to vector<32x32xbf16>
    %c0_3 = arith.constant 0 : index
    %c0_4 = arith.constant 0 : index
    %c0_5 = arith.constant 0 : index
    %5 = vector.load %arg2[%c0_3, %c0_4, %c0_5] : memref<1x16x32xbf16, #tpu.memory_space<vmem>>, vector<1x16x32xbf16>
    %6 = vector.shape_cast %5 : vector<1x16x32xbf16> to vector<16x32xbf16>
    %c0_i32_6 = arith.constant 0 : i32
    %7 = arith.cmpi sgt, %arg1, %c0_i32_6 : i32
    %cst = arith.constant 0.000000e+00 : bf16
    %8 = vector.broadcast %cst : bf16 to vector<16x32xbf16>
    %9 = arith.select %7, %6, %8 : vector<16x32xbf16>
    %10 = tpu.concatenate %9, %4 in 0 : vector<16x32xbf16>, vector<32x32xbf16> -> vector<48x32xbf16>
    %11 = vector.extract_strided_slice %10 {offsets = [12, 0], sizes = [32, 32], strides = [1, 1]} : vector<48x32xbf16> to vector<32x32xbf16>
    %12 = vector.extract_strided_slice %10 {offsets = [14, 0], sizes = [32, 32], strides = [1, 1]} : vector<48x32xbf16> to vector<32x32xbf16>
    %13 = vector.extract_strided_slice %10 {offsets = [16, 0], sizes = [32, 32], strides = [1, 1]} : vector<48x32xbf16> to vector<32x32xbf16>
    %14 = tpu.concatenate %11, %12, %13 in 1 : vector<32x32xbf16>, vector<32x32xbf16>, vector<32x32xbf16> -> vector<32x96xbf16>
    %c0_7 = arith.constant 0 : index
    %c0_8 = arith.constant 0 : index
    %15 = vector.load %arg4[%c0_7, %c0_8] : memref<96x32xbf16, #tpu.memory_space<vmem>>, vector<96x32xbf16>
    %cst_9 = arith.constant dense<0.000000e+00> : vector<32x32xf32>
    %16 = tpu.matmul %14, %15, %cst_9 {dimension_numbers = #tpu.dot_dimension_numbers<[1], [0], [0], [1], [0, 0, 1, 1], [], []>} : vector<32x96xbf16>, vector<96x32xbf16>, vector<32x32xf32> -> vector<32x32xf32>
    %c0_10 = arith.constant 0 : index
    %c0_11 = arith.constant 0 : index
    %c0_12 = arith.constant 0 : index
    %17 = vector.load %arg5[%c0_10, %c0_11, %c0_12] : memref<1x1x32xf32, #tpu.memory_space<vmem>>, vector<1x1x32xf32>
    %18 = vector.shape_cast %17 : vector<1x1x32xf32> to vector<1x32xf32>
    %cst_13 = arith.constant dense<0.000000e+00> : vector<32xf32>
    %19 = vector.multi_reduction <add>, %16, %cst_13 [0] : vector<32x32xf32> to vector<32xf32>
    %20 = vector.shape_cast %19 : vector<32xf32> to vector<1x32xf32>
    %21 = arith.addf %18, %20 : vector<1x32xf32>
    %c0_14 = arith.constant 0 : index
    %c0_15 = arith.constant 0 : index
    %c0_16 = arith.constant 0 : index
    %22 = vector.load %arg5[%c0_14, %c0_15, %c0_16] : memref<1x1x32xf32, #tpu.memory_space<vmem>>, vector<1x1x32xf32>
    %23 = vector.shape_cast %22 : vector<1x1x32xf32> to vector<1x32xf32>
    %24 = vector.shape_cast %21 : vector<1x32xf32> to vector<1x1x32xf32>
    tpu.vector_store %arg5[%c0_14, %c0_15, %c0_16], %24 {strides = array<i32>} : memref<1x1x32xf32, #tpu.memory_space<vmem>>, vector<1x1x32xf32>,
    %c0_17 = arith.constant 0 : index
    %c0_18 = arith.constant 0 : index
    %c0_19 = arith.constant 0 : index
    %25 = vector.load %arg6[%c0_17, %c0_18, %c0_19] : memref<1x1x32xf32, #tpu.memory_space<vmem>>, vector<1x1x32xf32>
    %26 = vector.shape_cast %25 : vector<1x1x32xf32> to vector<1x32xf32>
    %27 = arith.mulf %16, %16 : vector<32x32xf32>
    %cst_20 = arith.constant dense<0.000000e+00> : vector<32xf32>
    %28 = vector.multi_reduction <add>, %27, %cst_20 [0] : vector<32x32xf32> to vector<32xf32>
    %29 = vector.shape_cast %28 : vector<32xf32> to vector<1x32xf32>
    %30 = arith.addf %26, %29 : vector<1x32xf32>
    %c0_21 = arith.constant 0 : index
    %c0_22 = arith.constant 0 : index
    %c0_23 = arith.constant 0 : index
    %31 = vector.load %arg6[%c0_21, %c0_22, %c0_23] : memref<1x1x32xf32, #tpu.memory_space<vmem>>, vector<1x1x32xf32>
    %32 = vector.shape_cast %31 : vector<1x1x32xf32> to vector<1x32xf32>
    %33 = vector.shape_cast %30 : vector<1x32xf32> to vector<1x1x32xf32>
    tpu.vector_store %arg6[%c0_21, %c0_22, %c0_23], %33 {strides = array<i32>} : memref<1x1x32xf32, #tpu.memory_space<vmem>>, vector<1x1x32xf32>,
    return
  }
  func.func @transform_0(%arg0: i32, %arg1: i32) -> (i32, i32, i32) {
    %c2_i32 = arith.constant 2 : i32
    %0 = arith.muli %arg1, %c2_i32 : i32
    %c1_i32 = arith.constant 1 : i32
    %1 = arith.subi %0, %c1_i32 : i32
    %c0_i32 = arith.constant 0 : i32
    %2 = arith.maxsi %1, %c0_i32 : i32
    %c0_i32_0 = arith.constant 0 : i32
    %c0_i32_1 = arith.constant 0 : i32
    return %arg0, %2, %c0_i32_0 : i32, i32, i32
  }
  func.func @transform_1(%arg0: i32, %arg1: i32) -> (i32, i32, i32) {
    %c0_i32 = arith.constant 0 : i32
    %c0_i32_0 = arith.constant 0 : i32
    return %arg0, %arg1, %c0_i32 : i32, i32, i32
  }
  func.func @transform_2(%arg0: i32, %arg1: i32) -> (i32, i32) {
    %c0_i32 = arith.constant 0 : i32
    %c0_i32_0 = arith.constant 0 : i32
    %c0_i32_1 = arith.constant 0 : i32
    return %c0_i32, %c0_i32_0 : i32, i32
  }
  func.func @transform_3(%arg0: i32, %arg1: i32) -> (i32, i32, i32) {
    %c0_i32 = arith.constant 0 : i32
    %c0_i32_0 = arith.constant 0 : i32
    %c0_i32_1 = arith.constant 0 : i32
    return %arg0, %c0_i32, %c0_i32_0 : i32, i32, i32
  }
  func.func @transform_4(%arg0: i32, %arg1: i32) -> (i32, i32, i32) {
    %c0_i32 = arith.constant 0 : i32
    %c0_i32_0 = arith.constant 0 : i32
    %c0_i32_1 = arith.constant 0 : i32
    return %arg0, %c0_i32, %c0_i32_0 : i32, i32, i32
  }
}

</mosaic_0001>

<llo_original>
// kernel: tpu_custom_call.1
$region0: #{tpu_custom_call.1}
  #allocation0 [shape = 'u32[]', space=smem, size = 0x4, offset = 0x4, fixed_abs, tag = 'smem constant byte address 0x4 - core index']
  #allocation1 [shape = 'u32[144,128]{1,0:T(1,128)}', space=vmem, size = 0x12000, scoped, tag = 'internal scratch']
  %s0 = inlined_call_operand.vmem [shape: bf16[2,64,32], index: 0, kind: input, shape index: {}]
  %s1 = inlined_call_operand.vmem [shape: bf16[2,64,32], index: 1, kind: input, shape index: {}]
  %s2 = inlined_call_operand.vmem [shape: bf16[96,32], index: 2, kind: input, shape index: {}]
  %s3 = inlined_call_operand.hbm [shape: f32[2,1,32], index: 3, kind: output, shape index: {0}]
  %s4 = inlined_call_operand.hbm [shape: f32[2,1,32], index: 4, kind: output, shape index: {1}]
  %5 = xla_tuple %s3, %s4
  %s6 = sld [smem:[#allocation0]]
  $region57: #{tpu_custom_call.1} parent=0
    _
  %s8 = ssub.s32 1, %s6
  %s9 = scalar_select 0, %s8, %s6
  $region1: #{tpu_custom_call.1} parent=0
    #allocation2 [shape = 'u8[1024]{0}', space=vmem, size = 0x400, scoped, tag = 'output window, operand 0']
    #allocation3 [shape = 's32[2]{0}', space=sflag, size = 0x8, scoped, tag = 'scoped memory for tpu_custom_call.1']
    #allocation4 [shape = 'u8[1024]{0}', space=vmem, size = 0x400, scoped, tag = 'output window, operand 1']
    #allocation5 [shape = 's32[2]{0}', space=sflag, size = 0x8, scoped, tag = 'scoped memory for tpu_custom_call.1']
    %10 = vsyncpa [#allocation3], 0
    %s11 = scalar_lea.sflag [#allocation3], 1
    %12 = vsyncpa %s11, 0
    %13 = vsyncpa [#allocation5], 0
    %s14 = scalar_lea.sflag [#allocation5], 1
    %15 = vsyncpa %s14, 0
    loop: start=0, step=1, limit=6
    $region2: #{tpu_custom_call.1} parent=1 // loop_pre_header
      _
    $region3: #{tpu_custom_call.1} parent=1 // loop_header
      %s17 = sphi 0, %s21
      %p18 = scmp.ge.s32.totalorder %s17, 6
      %s24 = sphi 0, %s36
      %s25 = sphi 0, %s32
      %s26 = sphi 0, %s24
      %s27 = sphi 0, %s25
      %s28 = sphi 0, %s26
      %s29 = sphi 0, %s27
      %s49 = sphi 0, %s51
      %s52 = sphi 0, %s49
      %s53 = sphi 0, %s52
      %s69 = sphi 0, %s53
      %s77 = sphi 0, %s79
      %s80 = sphi 0, %s77
      %s81 = sphi 0, %s80
      %s97 = sphi 0, %s81
      %s101 = sphi 0, %s101
      %s103 = sphi 0, %s101
      %s104 = sphi 0, %s103
      %s118 = sphi 0, %s104
      %s124 = sphi 0, %s126
      %s127 = sphi 0, %s124
      %s128 = sphi 0, %s127
      %s144 = sphi 0, %s128
      %s150 = sphi 0, %s152
      %s153 = sphi 0, %s150
      %s154 = sphi 0, %s153
      %s170 = sphi 0, %s154
    $region4: #{tpu_custom_call.1} parent=1 // loop_header_branch
      %20 = sbr.rel (%p18) target = $region8
    $region5: #{tpu_custom_call.1} parent=1 // loop_body
      %s22 = ssub.s32 %s17, 1
      %s23 = ssub.s32 %s17, 2
      %s30 = sadd.s32 1, %s25
      %p31 = scmp.ge.s32.totalorder %s30, 2
      %s32 = scalar_select %p31, 0, %s30
      %s33 = sadd.s32 1, %s24
      %s34 = scalar_select %p31, %s33, %s24
      %p35 = scmp.ge.s32.totalorder %s34, 2
      %s36 = scalar_select %p35, 0, %s34
      %s37 = smul.u32 %s25, 2
      %s38 = ssub.s32 %s37, 1
      %p39 = scmp.gt.s32.totalorder %s38, 0
      %s40 = scalar_select %p39, %s38, 0
      %s41 = smul.u32 %s32, 2
      %s42 = ssub.s32 %s41, 1
      %p43 = scmp.gt.s32.totalorder %s42, 0
      %s44 = scalar_select %p43, %s42, 0
      %s45 = ssub.s32 %s24, %s36
      %s46 = ssub.s32 %s40, %s44
      %s47 = sor.u32 %s45, %s46
      %p48 = scmp.eq.s32.totalorder %s47, 0
      %s50 = sadd.s32 %s49, 1
      %s51 = scalar_select %p48, %s49, %s50
      %p54 = pneg %p48
      %p55 = scmp.eq.s32.totalorder %s17, 3
      %p56 = por %p54, %p55
      %p57 = scmp.ne.s32.totalorder %s49, %s52
      %p58 = scmp.eq.s32.totalorder %s17, 0
      %p59 = por %p57, %p58
      %p60 = scmp.ne.s32.totalorder %s49, %s52
      %p61 = scmp.eq.s32.totalorder %s22, 3
      %p62 = por %p60, %p61
      %p63 = scmp.ne.s32.totalorder %s52, %s53
      %p64 = scmp.eq.s32.totalorder %s22, 0
      %p65 = por %p63, %p64
      %p66 = scmp.ne.s32.totalorder %s52, %s53
      %p67 = scmp.eq.s32.totalorder %s23, 3
      %p68 = por %p66, %p67
      %p70 = scmp.ne.s32.totalorder %s53, %s69
      %p71 = scmp.eq.s32.totalorder %s23, 0
      %p72 = por %p70, %p71
      %s73 = ssub.s32 %s24, %s36
      %s74 = ssub.s32 %s25, %s32
      %s75 = sor.u32 %s73, %s74
      %p76 = scmp.eq.s32.totalorder %s75, 0
      %s78 = sadd.s32 %s77, 1
      %s79 = scalar_select %p76, %s77, %s78
      %p82 = pneg %p76
      %p83 = scmp.eq.s32.totalorder %s17, 3
      %p84 = por %p82, %p83
      %p85 = scmp.ne.s32.totalorder %s77, %s80
      %p86 = scmp.eq.s32.totalorder %s17, 0
      %p87 = por %p85, %p86
      %p88 = scmp.ne.s32.totalorder %s77, %s80
      %p89 = scmp.eq.s32.totalorder %s22, 3
      %p90 = por %p88, %p89
      %p91 = scmp.ne.s32.totalorder %s80, %s81
      %p92 = scmp.eq.s32.totalorder %s22, 0
      %p93 = por %p91, %p92
      %p94 = scmp.ne.s32.totalorder %s80, %s81
      %p95 = scmp.eq.s32.totalorder %s23, 3
      %p96 = por %p94, %p95
      %p98 = scmp.ne.s32.totalorder %s81, %s97
      %p99 = scmp.eq.s32.totalorder %s23, 0
      %p100 = por %p98, %p99
      %s102 = sadd.s32 %s101, 1
      %p105 = scmp.eq.s32.totalorder %s17, 3
      %p106 = scmp.ne.s32.totalorder %s101, %s103
      %p107 = scmp.eq.s32.totalorder %s17, 0
      %p108 = por %p106, %p107
      %p109 = scmp.ne.s32.totalorder %s101, %s103
      %p110 = scmp.eq.s32.totalorder %s22, 3
      %p111 = por %p109, %p110
      %p112 = scmp.ne.s32.totalorder %s103, %s104
      %p113 = scmp.eq.s32.totalorder %s22, 0
      %p114 = por %p112, %p113
      %p115 = scmp.ne.s32.totalorder %s103, %s104
      %p116 = scmp.eq.s32.totalorder %s23, 3
      %p117 = por %p115, %p116
      %p119 = scmp.ne.s32.totalorder %s104, %s118
      %p120 = scmp.eq.s32.totalorder %s23, 0
      %p121 = por %p119, %p120
      %s122 = ssub.s32 %s24, %s36
      %p123 = scmp.eq.s32.totalorder %s122, 0
      %s125 = sadd.s32 %s124, 1
      %s126 = scalar_select %p123, %s124, %s125
      %p129 = pneg %p123
      %p130 = scmp.eq.s32.totalorder %s17, 3
      %p131 = por %p129, %p130
      %p132 = scmp.ne.s32.totalorder %s124, %s127
      %p133 = scmp.eq.s32.totalorder %s17, 0
      %p134 = por %p132, %p133
      %p135 = scmp.ne.s32.totalorder %s124, %s127
      %p136 = scmp.eq.s32.totalorder %s22, 3
      %p137 = por %p135, %p136
      %p138 = scmp.ne.s32.totalorder %s127, %s128
      %p139 = scmp.eq.s32.totalorder %s22, 0
      %p140 = por %p138, %p139
      %p141 = scmp.ne.s32.totalorder %s127, %s128
      %p142 = scmp.eq.s32.totalorder %s23, 3
      %p143 = por %p141, %p142
      %p145 = scmp.ne.s32.totalorder %s128, %s144
      %p146 = scmp.eq.s32.totalorder %s23, 0
      %p147 = por %p145, %p146
      %s148 = ssub.s32 %s24, %s36
      %p149 = scmp.eq.s32.totalorder %s148, 0
      %s151 = sadd.s32 %s150, 1
      %s152 = scalar_select %p149, %s150, %s151
      %p155 = pneg %p149
      %p156 = scmp.eq.s32.totalorder %s17, 3
      %p157 = por %p155, %p156
      %p158 = scmp.ne.s32.totalorder %s150, %s153
      %p159 = scmp.eq.s32.totalorder %s17, 0
      %p160 = por %p158, %p159
      %p161 = scmp.ne.s32.totalorder %s150, %s153
      %p162 = scmp.eq.s32.totalorder %s22, 3
      %p163 = por %p161, %p162
      %p164 = scmp.ne.s32.totalorder %s153, %s154
      %p165 = scmp.eq.s32.totalorder %s22, 0
      %p166 = por %p164, %p165
      %p167 = scmp.ne.s32.totalorder %s153, %s154
      %p168 = scmp.eq.s32.totalorder %s23, 3
      %p169 = por %p167, %p168
      %p171 = scmp.ne.s32.totalorder %s154, %s170
      %p172 = scmp.eq.s32.totalorder %s23, 0
      %p173 = por %p171, %p172
      %p174 = scmp.le.s32.totalorder 1, %s17
      %p175 = scmp.lt.s32.totalorder %s17, 5
      %p176 = pnand %p174, %p175
      %p177 = pneg %p176
      // Predicated region
      $region9: #{tpu_custom_call.1} parent=5 // pred_check
        _
      $region10: #{tpu_custom_call.1} parent=5 // pred_check_branch
        %179 = sbr.rel (%p176) target = $region12
      $region11: #{tpu_custom_call.1} parent=5 // pred_region
        %s180 = ssub.s32 %s17, 1
        // Predicated region
        $region13: #{tpu_custom_call.1} parent=11 // pred_check
          %p181 = pneg %p114
        $region14: #{tpu_custom_call.1} parent=11 // pred_check_branch
          %183 = sbr.rel (%p181) target = $region16
        $region15: #{tpu_custom_call.1} parent=11 // pred_region
          _
        $region16: #{tpu_custom_call.1} parent=11 // pred_fallthru
          _
      $region12: #{tpu_custom_call.1} parent=5 // pred_fallthru
        _
      %p184 = scmp.lt.s32.totalorder %s17, 4
      // Predicated region
      $region17: #{tpu_custom_call.1} parent=5 // pred_check
        %p185 = pneg %p184
      $region18: #{tpu_custom_call.1} parent=5 // pred_check_branch
        %187 = sbr.rel (%p185) target = $region20
      $region19: #{tpu_custom_call.1} parent=5 // pred_region
        // Predicated region
        $region21: #{tpu_custom_call.1} parent=19 // pred_check
          %p188 = pneg %p59
        $region22: #{tpu_custom_call.1} parent=19 // pred_check_branch
          %190 = sbr.rel (%p188) target = $region24
        $region23: #{tpu_custom_call.1} parent=19 // pred_region
          %s191 = smul.u32 %s25, 2
          %s192 = ssub.s32 %s191, 1
          %p193 = scmp.gt.s32.totalorder %s192, 0
          %s194 = scalar_select %p193, %s192, 0
          %s195 = smul.u32 2, %s194
          %p196 = scmp.lt.s32.totalorder %s24, 1
          %s197 = scalar_select %p196, %s24, 1
          %p198 = scmp.lt.s32.totalorder %s195, 7
          %s199 = scalar_select %p198, %s195, 7
          %s200 = smul.addr %s197, 8
          %s201 = sadd.s32 %s199, %s200
          %s202 = smul.addr %s201, 4
          %s203 = scalar_lea.vmem %s0, %s202
          %s204 = smul.u32 %s25, 2
          %s205 = ssub.s32 %s204, 1
          %p206 = scmp.gt.s32.totalorder %s205, 0
          %s207 = scalar_select %p206, %s205, 0
          %s208 = smul.u32 2, %s207
        $region24: #{tpu_custom_call.1} parent=19 // pred_fallthru
          _
        // Predicated region
        $region25: #{tpu_custom_call.1} parent=19 // pred_check
          %p209 = pneg %p87
        $region26: #{tpu_custom_call.1} parent=19 // pred_check_branch
          %211 = sbr.rel (%p209) target = $region28
        $region27: #{tpu_custom_call.1} parent=19 // pred_region
          %s212 = smul.u32 4, %s25
          %p213 = scmp.lt.s32.totalorder %s24, 1
          %s214 = scalar_select %p213, %s24, 1
          %p215 = scmp.lt.s32.totalorder %s212, 7
          %s216 = scalar_select %p215, %s212, 7
          %s217 = smul.addr %s214, 8
          %s218 = sadd.s32 %s216, %s217
          %s219 = smul.addr %s218, 4
          %s220 = scalar_lea.vmem %s1, %s219
          %s221 = smul.u32 4, %s25
        $region28: #{tpu_custom_call.1} parent=19 // pred_fallthru
          _
      $region20: #{tpu_custom_call.1} parent=5 // pred_fallthru
        _
      %p222 = scmp.le.s32.totalorder 1, %s17
      %p223 = scmp.lt.s32.totalorder %s17, 5
      %p224 = pnand %p222, %p223
      %p225 = pneg %p224
      // Predicated region
      $region29: #{tpu_custom_call.1} parent=5 // pred_check
        _
      $region30: #{tpu_custom_call.1} parent=5 // pred_check_branch
        %227 = sbr.rel (%p224) target = $region32
      $region31: #{tpu_custom_call.1} parent=5 // pred_region
        %s228 = ssub.s32 %s17, 1
        %s229 = smul.u32 %s27, 2
        %s230 = ssub.s32 %s229, 1
        %p231 = scmp.gt.s32.totalorder %s230, 0
        %s232 = scalar_select %p231, %s230, 0
        %s233 = smul.u32 2, %s232
        %p234 = scmp.lt.s32.totalorder %s26, 1
        %s235 = scalar_select %p234, %s26, 1
        %p236 = scmp.lt.s32.totalorder %s233, 7
        %s237 = scalar_select %p236, %s233, 7
        %s238 = smul.addr %s235, 8
        %s239 = sadd.s32 %s237, %s238
        %s240 = smul.addr %s239, 4
        %s241 = scalar_lea.vmem %s0, %s240
        %p242 = pneg %p65
        %p243 = pneg %p62
        %s244 = smul.u32 4, %s27
        %p245 = scmp.lt.s32.totalorder %s26, 1
        %s246 = scalar_select %p245, %s26, 1
        %p247 = scmp.lt.s32.totalorder %s244, 7
        %s248 = scalar_select %p247, %s244, 7
        %s249 = smul.addr %s246, 8
        %s250 = sadd.s32 %s248, %s249
        %s251 = smul.addr %s250, 4
        %s252 = scalar_lea.vmem %s1, %s251
        %p253 = pneg %p93
        %p254 = pneg %p90
        %p255 = pneg %p114
        %p256 = pneg %p111
        %p257 = pneg %p140
        %p258 = pneg %p137
        %s259 = sand.u32 %s127, 1
        %s260 = scalar_lea.sflag [#allocation3], %s259
        %s261 = sand.u32 %s127, 1
        %s262 = scalar_lea.vmem [#allocation2], %s261
        %p263 = pneg %p166
        %p264 = pneg %p163
        %s265 = sand.u32 %s153, 1
        %s266 = scalar_lea.sflag [#allocation5], %s265
        %s267 = sand.u32 %s153, 1
        %s268 = scalar_lea.vmem [#allocation4], %s267
        %s269 = smul.u32 %s27, 2
        %s270 = ssub.s32 %s269, 1
        %p271 = scmp.gt.s32.totalorder %s270, 0
        %s272 = scalar_select %p271, %s270, 0
        %s273 = smul.u32 2, %s272
        %p274 = scmp.lt.s32.totalorder %s26, 1
        %s275 = scalar_select %p274, %s26, 1
        %p276 = scmp.lt.s32.totalorder %s273, 7
        %s277 = scalar_select %p276, %s273, 7
        %s278 = smul.addr %s275, 8
        %s279 = sadd.s32 %s277, %s278
        %s280 = smul.addr %s279, 4
        %s281 = scalar_lea.vmem %s0, %s280
        %s282 = smul.u32 %s27, 2
        %s283 = ssub.s32 %s282, 1
        %p284 = scmp.gt.s32.totalorder %s283, 0
        %s285 = scalar_select %p284, %s283, 0
        %s286 = smul.u32 2, %s285
        %s287 = smul.u32 4, %s27
        %p288 = scmp.lt.s32.totalorder %s26, 1
        %s289 = scalar_select %p288, %s26, 1
        %p290 = scmp.lt.s32.totalorder %s287, 7
        %s291 = scalar_select %p290, %s287, 7
        %s292 = smul.addr %s289, 8
        %s293 = sadd.s32 %s291, %s292
        %s294 = smul.addr %s293, 4
        %s295 = scalar_lea.vmem %s1, %s294
        %s296 = smul.u32 4, %s27
        %p298 = scmp.eq.s32.totalorder %s27, 0
        // Predicated region
        $region33: #{tpu_custom_call.1} parent=31 // pred_check
          %p299 = pneg %p298
        $region34: #{tpu_custom_call.1} parent=31 // pred_check_branch
          %301 = sbr.rel (%p299) target = $region36
        $region35: #{tpu_custom_call.1} parent=31 // pred_region
          %vm302 = vcmask 253952
          %303 = vst.msk [vmem:[%s262] sm:$0x1] %vm302, 0.0
          %304 = vst.msk [vmem:[%s268] sm:$0x1] %vm302, 0.0
        $region36: #{tpu_custom_call.1} parent=31 // pred_fallthru
          _
        %v305 = vld [vmem:[%s295] sm:$0xf]
        %v306 = vld [vmem:[%s295 + $0x4] sm:$0xf]
        %v307 = vld [vmem:[%s295 + $0x8] sm:$0xf]
        %v308 = vld [vmem:[%s295 + $0xc] sm:$0xf]
        %v309 = vld [vmem:[%s281] sm:$0xf]
        %v310 = vld [vmem:[%s281 + $0x4] sm:$0xf]
        %p311 = scmp.gt.s32.totalorder %s27, 0
        %s312 = scalar_select %p311, 1, 0
        %v313 = vstv %s312
        %vm314 = vcmp.eq.s32.totalorder %v313, 1
        %v315 = vsel %vm314, %v309, 0
        %v316 = vsel %vm314, %v310, 0
        %v319 = vunpack.c.l.b16 %v315
        %v320 = vunpack.c.l.b16 %v316
        %v321 = vpack.c.b16 %v320, %v319
        %v326 = vunpack.c.l.b16 %v305
        %v327 = vunpack.c.l.b16 %v306
        %v328 = vunpack.c.l.b16 %v307
        %v329 = vunpack.c.l.b16 %v308
        %v330 = vpack.c.b16 %v327, %v326
        %v331 = vpack.c.b16 %v329, %v328
        %vm332 = vcmask 1046528
        %v333 = vrot.slane %v321, 1
        %v334 = vrot.slane %v330, 1
        %v335 = vsel %vm332, %v333, %v334
        %v336 = vrot.slane %v331, 1
        %v337 = vsel %vm332, %v334, %v336
        %338 = vrot.lane.b32.xlu0 %v335, 32
        %v339 = vpop.permute.xlu0 %338
        %340 = vrot.lane.b32.xlu0 %v337, 32
        %v341 = vpop.permute.xlu0 %340
        %342 = vrot.lane.b32.xlu0 %v336, 32
        %v343 = vpop.permute.xlu0 %342
        %vm344 = vcmask 1045504
        %v345 = vrot.slane %v330, 2
        %v346 = vrot.slane %v331, 2
        %v347 = vsel %vm344, %v345, %v346
        %348 = vrot.lane.b32.xlu0 %v345, 64
        %v349 = vpop.permute.xlu0 %348
        %350 = vrot.lane.b32.xlu0 %v347, 64
        %v351 = vpop.permute.xlu0 %350
        %352 = vrot.lane.b32.xlu0 %v346, 64
        %v353 = vpop.permute.xlu0 %352
        %vm354 = vcmask 261120
        %v357 = vsel %vm354, %v321, %v339
        %v360 = vsel %vm354, %v330, %v341
        %v363 = vsel %vm354, %v331, %v343
        %vm364 = vcmask 523264
        %v366 = vsel %vm364, %v357, %v349
        %v368 = vsel %vm364, %v360, %v351
        %v370 = vsel %vm364, %v363, %v353
        %v371 = vld [vmem:[%s2] sm:$0xf]
        %v372 = vld [vmem:[%s2 + $0x4] sm:$0xf]
        %v373 = vld [vmem:[%s2 + $0x8] sm:$0xf]
        %v374 = vld [vmem:[%s2 + $0xc] sm:$0xf]
        %v375 = vld [vmem:[%s2 + $0x10] sm:$0xf]
        %v376 = vld [vmem:[%s2 + $0x14] sm:$0xf]
        %v377 = vld [vmem:[%s2 + $0x18] sm:$0xf]
        %v378 = vld [vmem:[%s2 + $0x1c] sm:$0xf]
        %v379 = vld [vmem:[%s2 + $0x20] sm:$0xf]
        %v380 = vld [vmem:[%s2 + $0x24] sm:$0xf]
        %v381 = vld [vmem:[%s2 + $0x28] sm:$0xf]
        %v382 = vld [vmem:[%s2 + $0x2c] sm:$0xf]
        %vm386 = vcmask 1041408
        %v387 = vrot.slane %v366, 6
        %v388 = vrot.slane %v368, 6
        %v389 = vsel %vm386, %v387, %v388
        %v390 = vrot.slane %v370, 6
        %v391 = vsel %vm386, %v388, %v390
        %v404 = vunpack.c.l.b16 %v371
        %v405 = vunpack.c.l.b16 %v372
        %v406 = vunpack.c.l.b16 %v373
        %v407 = vunpack.c.l.b16 %v374
        %v408 = vunpack.c.l.b16 %v375
        %v409 = vunpack.c.l.b16 %v376
        %v410 = vunpack.c.l.b16 %v377
        %v411 = vunpack.c.l.b16 %v378
        %v412 = vunpack.c.l.b16 %v379
        %v413 = vunpack.c.l.b16 %v380
        %v414 = vunpack.c.l.b16 %v381
        %v415 = vunpack.c.l.b16 %v382
        %v416 = vpack.c.b16 %v405, %v404
        %v417 = vpack.c.b16 %v407, %v406
        %v418 = vpack.c.b16 %v409, %v408
        %v419 = vpack.c.b16 %v411, %v410
        %v420 = vpack.c.b16 %v413, %v412
        %v421 = vpack.c.b16 %v415, %v414
        %vm428 = vcmask 785408
        %v430 = vsel %vm428, %v389, 0
        %v433 = vsel %vm428, %v391, 0
        %435 = vmatprep.subr.bf16.mxu0 0
        %436 = vmatpush1.bf16.msra.mxu0 0
        %437 = vmatprep.subr.bf16.mxu0 0
        %438 = vmatpush1.bf16.msra.mxu0 0
        %439 = vmatprep.subr.bf16.mxu0 0
        %440 = vmatpush1.bf16.msra.mxu0 %v421
        %441 = vmatprep.subr.bf16.mxu0 0
        %442 = vmatpush1.bf16.msra.mxu0 %v420
        %443 = vmatprep.subr.bf16.mxu0 0
        %444 = vmatpush1.bf16.msra.mxu0 %v419
        %445 = vmatprep.subr.bf16.mxu0 0
        %446 = vmatpush1.bf16.msra.mxu0 %v418
        %447 = vmatprep.subr.bf16.mxu0 0
        %448 = vmatpush1.bf16.msra.mxu0 %v417
        %449 = vmatprep.subr.bf16.mxu0 0
        %450 = vmatpush1.bf16.msra.mxu0 %v416
        %451 = vmatprep.subr.bf16.mxu0 0
        %452 = vmatpush2.bf16.msra.mxu0 0
        %453 = vmatprep.subr.bf16.mxu0 0
        %454 = vmatpush2.bf16.msra.mxu0 0
        %455 = vmatprep.subr.bf16.mxu0 0
        %456 = vmatpush2.bf16.msra.mxu0 0
        %457 = vmatprep.subr.bf16.mxu0 0
        %458 = vmatpush2.bf16.msra.mxu0 0
        %459 = vmatprep.subr.bf16.mxu0 0
        %460 = vmatpush2.bf16.msra.mxu0 0
        %461 = vmatprep.subr.bf16.mxu0 0
        %462 = vmatpush2.bf16.msra.mxu0 0
        %463 = vmatprep.subr.bf16.mxu0 0
        %464 = vmatpush2.bf16.msra.mxu0 0
        %465 = vmatprep.subr.bf16.mxu0 0
        %466 = vmatpush2.bf16.msra.mxu0 0
        %467 = vmatprep.mubr.bf16.mxu0 0
        %468 = vmatmul.mubr.bf16.gmra.mxu0 %v430
        %v469 = vpop.f32.mrf.mxu0
        %v470 = vadd.f32 0.0, %v469
        %v471 = vpop.f32.mrf.mxu0
        %v472 = vpop.f32.mrf.mxu0
        %v473 = vadd.f32 0.0, %v472
        %v474 = vpop.f32.mrf.mxu0
        %475 = vmatprep.mubr.bf16.mxu0 0
        %476 = vmatmul.mubr.bf16.gmra.mxu0 %v433
        %v477 = vpop.f32.mrf.mxu0
        %v478 = vadd.f32 0.0, %v477
        %v479 = vpop.f32.mrf.mxu0
        %v480 = vpop.f32.mrf.mxu0
        %v481 = vadd.f32 0.0, %v480
        %v482 = vpop.f32.mrf.mxu0
        %483 = vdwg.mxu0
        %v484 = vld [vmem:[%s262] sm:$0x1]
        %v485 = vsel %vm354, %v470, 0.0
        %v486 = vsel %vm354, %v473, 0.0
        %v487 = vadd.f32 %v485, %v486
        %v488 = vsel %vm354, %v478, 0.0
        %v489 = vadd.f32 %v487, %v488
        %v490 = vsel %vm354, %v481, 0.0
        %v491 = vadd.f32 %v489, %v490
        %v492 = vrot.slane %v491, 4
        %v493 = vadd.f32 %v491, %v492
        %v494 = vrot.slane %v493, 2
        %v495 = vadd.f32 %v493, %v494
        %v496 = vrot.slane %v495, 1
        %v497 = vadd.f32 %v495, %v496
        %v498 = vadd.f32 %v484, %v497
        %vm499 = vcmask 253952
        %500 = vst.msk [vmem:[%s262] sm:$0x1] %vm499, %v498
        %v501 = vld [vmem:[%s268] sm:$0x1]
        %v502 = vmul.f32 %v470, %v470
        %v503 = vmul.f32 %v473, %v473
        %v504 = vmul.f32 %v478, %v478
        %v505 = vmul.f32 %v481, %v481
        %v506 = vsel %vm354, %v502, 0.0
        %v507 = vsel %vm354, %v503, 0.0
        %v508 = vadd.f32 %v506, %v507
        %v509 = vsel %vm354, %v504, 0.0
        %v510 = vadd.f32 %v508, %v509
        %v511 = vsel %vm354, %v505, 0.0
        %v512 = vadd.f32 %v510, %v511
        %v513 = vrot.slane %v512, 4
        %v514 = vadd.f32 %v512, %v513
        %v515 = vrot.slane %v514, 2
        %v516 = vadd.f32 %v514, %v515
        %v517 = vrot.slane %v516, 1
        %v518 = vadd.f32 %v516, %v517
        %v519 = vadd.f32 %v501, %v518
        %520 = vst.msk [vmem:[%s268] sm:$0x1] %vm499, %v519
        %s521 = sand.u32 %s127, 1
        %s522 = scalar_lea.sflag [#allocation3], %s521
        %s523 = sand.u32 %s127, 1
        %s524 = scalar_lea.vmem [#allocation2], %s523
        %s525 = sand.u32 %s153, 1
        %s526 = scalar_lea.sflag [#allocation5], %s525
        %s527 = sand.u32 %s153, 1
        %s528 = scalar_lea.vmem [#allocation4], %s527
        // Predicated region
        $region37: #{tpu_custom_call.1} parent=31 // pred_check
          %p529 = pneg %p137
        $region38: #{tpu_custom_call.1} parent=31 // pred_check_branch
          %531 = sbr.rel (%p529) target = $region40
        $region39: #{tpu_custom_call.1} parent=31 // pred_region
          %s533 = ssub.s32 16, 16
          %534 = vsyncadd %s522, %s533
          %s535 = smul.addr %s26, 16
          %s536 = scalar_lea.hbm %s3, %s535
          %s538 = sshll.u32 %s524, 4
          %s539 = int_to_ptr.vmem [resolvable:$true] %s538
          %541 = dma.vmem_to_hbm [thread:$0]  %s539, 16, %s536, %s522
        $region40: #{tpu_custom_call.1} parent=31 // pred_fallthru
          _
        // Predicated region
        $region41: #{tpu_custom_call.1} parent=31 // pred_check
          %p542 = pneg %p163
        $region42: #{tpu_custom_call.1} parent=31 // pred_check_branch
          %544 = sbr.rel (%p542) target = $region44
        $region43: #{tpu_custom_call.1} parent=31 // pred_region
          %s546 = ssub.s32 16, 16
          %547 = vsyncadd %s526, %s546
          %s548 = smul.addr %s26, 16
          %s549 = scalar_lea.hbm %s4, %s548
          %s551 = sshll.u32 %s528, 4
          %s552 = int_to_ptr.vmem [resolvable:$true] %s551
          %554 = dma.vmem_to_hbm [thread:$0]  %s552, 16, %s549, %s526
        $region44: #{tpu_custom_call.1} parent=31 // pred_fallthru
          _
      $region32: #{tpu_custom_call.1} parent=5 // pred_fallthru
        _
      %p555 = scmp.le.s32.totalorder 2, %s17
      // Predicated region
      $region45: #{tpu_custom_call.1} parent=5 // pred_check
        %p556 = pneg %p555
      $region46: #{tpu_custom_call.1} parent=5 // pred_check_branch
        %558 = sbr.rel (%p556) target = $region48
      $region47: #{tpu_custom_call.1} parent=5 // pred_region
        %s559 = ssub.s32 %s17, 2
        // Predicated region
        $region49: #{tpu_custom_call.1} parent=47 // pred_check
          %p560 = pneg %p143
        $region50: #{tpu_custom_call.1} parent=47 // pred_check_branch
          %562 = sbr.rel (%p560) target = $region52
        $region51: #{tpu_custom_call.1} parent=47 // pred_region
          %s563 = sand.u32 %s128, 1
          %s564 = scalar_lea.sflag [#allocation3], %s563
          %s565 = sand.u32 %s128, 1
          %s566 = scalar_lea.vmem [#allocation2], %s565
          %567 = dma.done %s564, 16
        $region52: #{tpu_custom_call.1} parent=47 // pred_fallthru
          _
        // Predicated region
        $region53: #{tpu_custom_call.1} parent=47 // pred_check
          %p568 = pneg %p169
        $region54: #{tpu_custom_call.1} parent=47 // pred_check_branch
          %570 = sbr.rel (%p568) target = $region56
        $region55: #{tpu_custom_call.1} parent=47 // pred_region
          %s571 = sand.u32 %s154, 1
          %s572 = scalar_lea.sflag [#allocation5], %s571
          %s573 = sand.u32 %s154, 1
          %s574 = scalar_lea.vmem [#allocation4], %s573
          %575 = dma.done %s572, 16
        $region56: #{tpu_custom_call.1} parent=47 // pred_fallthru
          _
      $region48: #{tpu_custom_call.1} parent=5 // pred_fallthru
        _
    $region6: #{tpu_custom_call.1} parent=1 // loop_footer
      %s21 = sadd.s32 1, %s17
    $region7: #{tpu_custom_call.1} parent=1 // loop_footer_branch
      %16 = sbr.rel target = $region3
    $region8: #{tpu_custom_call.1} parent=1 // loop_exit
      _
    %576 = vsyncpa [#allocation3], 1
    %s577 = scalar_lea.sflag [#allocation3], 1
    %578 = vsyncpa %s577, 1
    %579 = vsyncpa [#allocation5], 1
    %s580 = scalar_lea.sflag [#allocation5], 1
    %581 = vsyncpa %s580, 1

</llo_original>
